<compile_context>
chip_gen: v6e
topology: v6e:2x2x1
jax: 0.10.0
libtpu: 0.0.40
codegen_flags: <defaults>
</compile_context>

<pallas_src>
import jax
import jax.numpy as jnp
from jax import lax
from jax.experimental import pallas as pl
from jax.experimental.pallas import tpu as pltpu

ROW_QUANTUM = 16  # sublane multiple that is layout-safe for both f32 and bf16 blocks


def _round_up(x, m):
    return ((x + m - 1) // m) * m


def _vmem_capacity_bytes(default=64 << 20):
    """Physical VMEM per TensorCore; conservative (v7x per-TC) fallback."""
    try:
        return int(pltpu.get_tpu_info().vmem_capacity_bytes)
    except Exception:
        return default


def _default_vmem_budget():
    cap = _vmem_capacity_bytes()
    # Keep double-buffered inputs + body temporaries well under the per-core
    # capacity, leaving room for Mosaic internal scratch.
    return min(int(cap * 0.6), 80 << 20)


def _vmem_usage_bytes(br, T, state_itemsize, param_itemsize):
    inputs = 2 * T * br * 128 * state_itemsize + br * 128 * param_itemsize
    out = 8 * 128 * 4
    temps = 4 * br * 128 * 4          # f32 accumulator + upcast param + diff/prod temps
    return 2 * (inputs + out) + temps  # x2: double-buffered pipeline


def _choose_block_rows(R, T, state_itemsize, param_itemsize, block_rows, budget):
    """Largest sublane-dense row block that keeps double-buffered inputs plus
    the body's f32 temporaries inside the VMEM budget."""
    per_row = 128 * (2 * (2 * T * state_itemsize + param_itemsize) + 4 * 4)
    fixed = 2 * 8 * 128 * 4
    max_br = max(ROW_QUANTUM,
                 ((max(budget - fixed, 0) // per_row) // ROW_QUANTUM) * ROW_QUANTUM)
    br = min(block_rows, max_br, _round_up(R, ROW_QUANTUM))
    br = max(ROW_QUANTUM, (br // ROW_QUANTUM) * ROW_QUANTUM)
    # v7x megacore: the "parallel" grid axis shards chunks across the two
    # TensorCores, so guarantee >= 2 chunks whenever the row count allows it.
    if R > ROW_QUANTUM and br >= R:
        br = max(ROW_QUANTUM, _round_up(pl.cdiv(R, 2), ROW_QUANTUM))
    return br


def _ewc_partial_kernel(fisher_ref, optpar_ref, param_ref, out_ref):
    """Partial sum of fisher * (optpar - param)^2 for one row chunk.

    fisher_ref, optpar_ref : (T, br, 128) f32/bf16 -- per-task tiles of this chunk
    param_ref              : (br, 128)    f32      -- current params (shared by tasks)
    out_ref                : (1, 8, 128)  f32      -- per-chunk partial sum
    """
    T = fisher_ref.shape[0]
    param = param_ref[...].astype(jnp.float32)

    def body(t, acc):
        diff = optpar_ref[t].astype(jnp.float32) - param
        return acc + fisher_ref[t].astype(jnp.float32) * (diff * diff)

    # Accumulate over tasks without materializing (T, br, 128) temporaries.
    acc = lax.fori_loop(0, T, body, jnp.zeros(param.shape, jnp.float32),
                        unroll=T <= 8)
    # br is a multiple of 16 -> reshape onto whole (8,128) vreg tiles is
    # layout-preserving; the leading-axis sum is plain vector adds (VPU only).
    out_ref[...] = jnp.sum(acc.reshape(-1, 8, 128), axis=0).reshape(1, 8, 128)


def prepare_ewc_state(fisher_per_task, optpar_per_task, *, state_dtype=jnp.float32,
                      block_rows=4096, vmem_budget_bytes=None):
    """Flatten, cast, pad and stack per-task fisher/optpar ONCE (at task-update
    time, not per loss call) and pick the tiling.  Returns a dict consumed by
    ewc_loss_pallas.

    fisher_per_task / optpar_per_task: list over tasks of lists of arrays,
    aligned with the model's named-parameter order.
    """
    T = len(fisher_per_task)
    assert len(optpar_per_task) == T
    state_dtype = jnp.dtype(state_dtype)
    if T == 0:
        return dict(fisher=jnp.zeros((0, ROW_QUANTUM, 128), state_dtype),
                    optpar=jnp.zeros((0, ROW_QUANTUM, 128), state_dtype),
                    block_rows=ROW_QUANTUM, rows_padded=ROW_QUANTUM,
                    n_raw=0, vmem_limit_bytes=16 << 20, state_dtype=state_dtype)

    n_raw = int(sum(int(a.size) for a in fisher_per_task[0]))
    R = pl.cdiv(n_raw, 128)                      # rows after lane padding
    budget = vmem_budget_bytes if vmem_budget_bytes is not None else _default_vmem_budget()
    br = _choose_block_rows(R, T, state_dtype.itemsize, 4, block_rows, budget)
    R_pad = _round_up(R, br)
    N_pad = R_pad * 128

    def flatten_pad(arrs):
        flat = jnp.concatenate([jnp.ravel(a).astype(state_dtype) for a in arrs])
        # fisher pads with zeros -> padded lanes contribute nothing to the sum.
        return jnp.pad(flat, (0, N_pad - flat.shape[0]))

    fisher = jnp.stack([flatten_pad(f) for f in fisher_per_task]).reshape(T, R_pad, 128)
    optpar = jnp.stack([flatten_pad(o) for o in optpar_per_task]).reshape(T, R_pad, 128)

    usage = _vmem_usage_bytes(br, T, state_dtype.itemsize, 4)
    cap = _vmem_capacity_bytes()
    # Explicit scoped-VMEM limit: actual usage + ~30% headroom, never below the
    # 16 MiB v5e default and never within 8 MiB of physical capacity.
    vmem_limit = int(min(max(usage * 1.3 + (2 << 20), 16 << 20), cap - (8 << 20)))

    return dict(fisher=fisher, optpar=optpar, block_rows=br, rows_padded=R_pad,
                n_raw=n_raw, vmem_limit_bytes=vmem_limit, state_dtype=state_dtype)


def flatten_current_params(params, state):
    """Flatten + pad the CURRENT model params to the state's [R_pad, 128] layout.
    This is the only per-call reshaping pass (params change every step)."""
    flat = jnp.concatenate([jnp.ravel(p).astype(jnp.float32) for p in params])
    n_pad = state["rows_padded"] * 128
    return jnp.pad(flat, (0, n_pad - flat.shape[0])).reshape(state["rows_padded"], 128)


def ewc_loss_pallas(state, params2d, ewc_lambda):
    """EWC loss: ewc_lambda * sum_t sum(fisher_t * (optpar_t - params)^2).

    Returns a shape-(1,) f32 array (matching the torch.Tensor([0]) convention).
    ewc_lambda may be a Python number or a traced JAX scalar.
    """
    T = state["fisher"].shape[0]
    # Early-out only for STATIC zero lambda / no tasks; traced lambdas go
    # through the kernel (lambda is applied outside -> no recompile per value).
    if T == 0 or (isinstance(ewc_lambda, (int, float)) and float(ewc_lambda) == 0.0):
        return jnp.zeros((1,), jnp.float32)

    br = state["block_rows"]
    R_pad = state["rows_padded"]
    n_chunks = R_pad // br
    assert params2d.shape == (R_pad, 128)

    partials = pl.pallas_call(
        _ewc_partial_kernel,
        out_shape=jax.ShapeDtypeStruct((n_chunks, 8, 128), jnp.float32),
        grid_spec=pltpu.PrefetchScalarGridSpec(
            num_scalar_prefetch=0,
            grid=(n_chunks,),
            in_specs=[
                pl.BlockSpec((T, br, 128), lambda i: (0, i, 0)),   # fisher
                pl.BlockSpec((T, br, 128), lambda i: (0, i, 0)),   # optpar
                pl.BlockSpec((br, 128), lambda i: (i, 0)),         # current params
            ],
            out_specs=pl.BlockSpec((1, 8, 128), lambda i: (i, 0, 0)),
        ),
        compiler_params=pltpu.CompilerParams(
            # Independent per-chunk partials -> fully parallel grid
            # (streams on both TensorCores on v7x).
            dimension_semantics=("parallel",),
            vmem_limit_bytes=int(state["vmem_limit_bytes"]),
        ),
    )(state["fisher"], state["optpar"], params2d)

    # ewc_lambda applied outside the kernel; tiny XLA reduction of partials.
    loss = jnp.asarray(ewc_lambda, jnp.float32) * jnp.sum(partials)
    return loss.reshape(1)


# ---------------------------------------------------------------------------
# Synthetic EWC state construction (replaces update_fisher_optpar bookkeeping).
# TODO(synk): the host-side fisher/optpar persistence and *_fisherN.bin dumps
# from update_fisher_optpar have no kernel equivalent and are not reproduced.
# ---------------------------------------------------------------------------
if __name__ == "__main__":
    # Small synthetic "model": conv weight/bias + fc weight/bias (the EWC loss
    # is purely elementwise over parameters, so only shapes matter).
    param_shapes = [
        (4, 4, 3, 3),   # conv weight (out_c, in_c, kH, kW)
        (4,),           # conv bias
        (64, 32),       # fc weight
        (64,),          # fc bias
    ]
    num_tasks = 2
    ewc_lambda = 0.4
    clip_value = 2.0

    key = jax.random.PRNGKey(0)
    keys = jax.random.split(key, 1 + 2 * num_tasks)

    pk = jax.random.split(keys[0], len(param_shapes))
    params = [jax.random.normal(pk[i], s, jnp.float32) for i, s in enumerate(param_shapes)]

    fishers, optpars = [], []
    for t in range(num_tasks):
        fk = jax.random.split(keys[1 + 2 * t], len(param_shapes))
        ok = jax.random.split(keys[2 + 2 * t], len(param_shapes))
        # fisher = clamp(grad^2, 0, clip_value)  (synthetic "grads")
        fishers.append([jnp.clip(jax.random.normal(fk[i], s, jnp.float32) ** 2,
                                 0.0, clip_value) for i, s in enumerate(param_shapes)])
        optpars.append([jax.random.normal(ok[i], s, jnp.float32)
                        for i, s in enumerate(param_shapes)])

    # Pure-JAX reference of EWCRegularizer.forward (f32 state).
    ref = jnp.zeros((), jnp.float32)
    for t in range(num_tasks):
        for f, o, p in zip(fishers[t], optpars[t], params):
            ref = ref + ewc_lambda * jnp.sum(f * (o - p) ** 2)

    # ---- f32 state (default) ------------------------------------------------
    state = prepare_ewc_state(fishers, optpars)            # one-time (per task update)
    params2d = flatten_current_params(params, state)       # per loss call
    loss = jax.block_until_ready(ewc_loss_pallas(state, params2d, ewc_lambda))
    assert jnp.allclose(loss[0], ref, rtol=1e-4, atol=1e-3), (loss, ref)

    # Traced lambda under jit: no Python-bool on a tracer, no recompile per value.
    loss_jit = jax.block_until_ready(
        jax.jit(lambda lam: ewc_loss_pallas(state, params2d, lam))(jnp.float32(ewc_lambda)))
    assert jnp.allclose(loss_jit[0], ref, rtol=1e-4, atol=1e-3), (loss_jit, ref)

    # Static zero lambda -> early out ("if not self.ewc_lambda").
    loss0 = ewc_loss_pallas(state, params2d, 0.0)
    assert float(loss0[0]) == 0.0

    # ---- bf16 state (halves HBM traffic of the dominant fisher/optpar streams)
    state_bf = prepare_ewc_state(fishers, optpars, state_dtype=jnp.bfloat16)
    params2d_bf = flatten_current_params(params, state_bf)
    loss_bf = jax.block_until_ready(ewc_loss_pallas(state_bf, params2d_bf, ewc_lambda))
    ref_bf = jnp.zeros((), jnp.float32)
    for t in range(num_tasks):
        for f, o, p in zip(fishers[t], optpars[t], params):
            fq = f.astype(jnp.bfloat16).astype(jnp.float32)
            oq = o.astype(jnp.bfloat16).astype(jnp.float32)
            ref_bf = ref_bf + ewc_lambda * jnp.sum(fq * (oq - p) ** 2)
    assert jnp.allclose(loss_bf[0], ref_bf, rtol=1e-4, atol=1e-3), (loss_bf, ref_bf)

    print("KERNEL_OK")
</pallas_src>

<mosaic_0001>
module attributes {stable_mosaic.version = 11 : i64} {
  func.func @_ewc_partial_kernel(%arg0: i32, %arg1: memref<2x16x128xf32, #tpu.memory_space<vmem>>, %arg2: memref<2x16x128xf32, #tpu.memory_space<vmem>>, %arg3: memref<16x128xf32, #tpu.memory_space<vmem>>, %arg4: memref<1x8x128xf32, #tpu.memory_space<vmem>>) attributes {dimension_semantics = [#tpu.dimension_semantics<parallel>], iteration_bounds = array<i64: 2>, scalar_prefetch = 0 : i64, scratch_operands = 0 : i64, tpu.core_type = #tpu.core_type<tc>, window_params = [{transform_indices = @transform_0, window_bounds = array<i64: 2, 16, 128>}, {transform_indices = @transform_1, window_bounds = array<i64: 2, 16, 128>}, {transform_indices = @transform_2, window_bounds = array<i64: 16, 128>}, {transform_indices = @transform_3, window_bounds = array<i64: 1, 8, 128>}]} {
    %c0 = arith.constant 0 : index
    %c0_0 = arith.constant 0 : index
    %0 = vector.load %arg3[%c0, %c0_0] : memref<16x128xf32, #tpu.memory_space<vmem>>, vector<16x128xf32>
    %cst = arith.constant 0.000000e+00 : f32
    %1 = vector.broadcast %cst : f32 to vector<16x128xf32>
    %c0_i32 = arith.constant 0 : i32
    %2 = arith.index_cast %c0_i32 : i32 to index
    %c0_1 = arith.constant 0 : index
    %c0_2 = arith.constant 0 : index
    %3 = vector.load %arg2[%2, %c0_1, %c0_2] : memref<2x16x128xf32, #tpu.memory_space<vmem>>, vector<1x16x128xf32>
    %4 = vector.shape_cast %3 : vector<1x16x128xf32> to vector<16x128xf32>
    %5 = arith.subf %4, %0 : vector<16x128xf32>
    %6 = arith.index_cast %c0_i32 : i32 to index
    %c0_3 = arith.constant 0 : index
    %c0_4 = arith.constant 0 : index
    %7 = vector.load %arg1[%6, %c0_3, %c0_4] : memref<2x16x128xf32, #tpu.memory_space<vmem>>, vector<1x16x128xf32>
    %8 = vector.shape_cast %7 : vector<1x16x128xf32> to vector<16x128xf32>
    %9 = arith.mulf %5, %5 : vector<16x128xf32>
    %10 = arith.mulf %8, %9 : vector<16x128xf32>
    %11 = arith.addf %1, %10 : vector<16x128xf32>
    %c1_i32 = arith.constant 1 : i32
    %12 = arith.index_cast %c1_i32 : i32 to index
    %c0_5 = arith.constant 0 : index
    %c0_6 = arith.constant 0 : index
    %13 = vector.load %arg2[%12, %c0_5, %c0_6] : memref<2x16x128xf32, #tpu.memory_space<vmem>>, vector<1x16x128xf32>
    %14 = vector.shape_cast %13 : vector<1x16x128xf32> to vector<16x128xf32>
    %15 = arith.subf %14, %0 : vector<16x128xf32>
    %16 = arith.index_cast %c1_i32 : i32 to index
    %c0_7 = arith.constant 0 : index
    %c0_8 = arith.constant 0 : index
    %17 = vector.load %arg1[%16, %c0_7, %c0_8] : memref<2x16x128xf32, #tpu.memory_space<vmem>>, vector<1x16x128xf32>
    %18 = vector.shape_cast %17 : vector<1x16x128xf32> to vector<16x128xf32>
    %19 = arith.mulf %15, %15 : vector<16x128xf32>
    %20 = arith.mulf %18, %19 : vector<16x128xf32>
    %21 = arith.addf %11, %20 : vector<16x128xf32>
    %c2_i32 = arith.constant 2 : i32
    %22 = vector.shape_cast %21 : vector<16x128xf32> to vector<2x8x128xf32>
    %cst_9 = arith.constant dense<0.000000e+00> : vector<8x128xf32>
    %23 = vector.multi_reduction <add>, %22, %cst_9 [0] : vector<2x8x128xf32> to vector<8x128xf32>
    %24 = vector.shape_cast %23 : vector<8x128xf32> to vector<1x8x128xf32>
    %c0_10 = arith.constant 0 : index
    %c0_11 = arith.constant 0 : index
    %c0_12 = arith.constant 0 : index
    %25 = vector.load %arg4[%c0_10, %c0_11, %c0_12] : memref<1x8x128xf32, #tpu.memory_space<vmem>>, vector<1x8x128xf32>
    tpu.vector_store %arg4[%c0_10, %c0_11, %c0_12], %24 {strides = array<i32>} : memref<1x8x128xf32, #tpu.memory_space<vmem>>, vector<1x8x128xf32>,
    return
  }
  func.func @transform_0(%arg0: i32) -> (i32, i32, i32) {
    %c0_i32 = arith.constant 0 : i32
    %c0_i32_0 = arith.constant 0 : i32
    %c0_i32_1 = arith.constant 0 : i32
    return %c0_i32, %arg0, %c0_i32_0 : i32, i32, i32
  }
  func.func @transform_1(%arg0: i32) -> (i32, i32, i32) {
    %c0_i32 = arith.constant 0 : i32
    %c0_i32_0 = arith.constant 0 : i32
    %c0_i32_1 = arith.constant 0 : i32
    return %c0_i32, %arg0, %c0_i32_0 : i32, i32, i32
  }
  func.func @transform_2(%arg0: i32) -> (i32, i32) {
    %c0_i32 = arith.constant 0 : i32
    %c0_i32_0 = arith.constant 0 : i32
    return %arg0, %c0_i32 : i32, i32
  }
  func.func @transform_3(%arg0: i32) -> (i32, i32, i32) {
    %c0_i32 = arith.constant 0 : i32
    %c0_i32_0 = arith.constant 0 : i32
    %c0_i32_1 = arith.constant 0 : i32
    return %arg0, %c0_i32, %c0_i32_0 : i32, i32, i32
  }
}

</mosaic_0001>

<llo_original>
// kernel: tpu_custom_call.1
$region0: #{tpu_custom_call.1}
  #allocation0 [shape = 'u32[]', space=smem, size = 0x4, offset = 0x4, fixed_abs, tag = 'smem constant byte address 0x4 - core index']
  #allocation1 [shape = 'u32[144,128]{1,0:T(1,128)}', space=vmem, size = 0x12000, scoped, tag = 'internal scratch']
  #allocation9 [shape = 's32[]', space=sflag, size = 0x4, offset = 0, fixed_abs, tag = 'sflag constant byte address 0x0 - dummy sync flag']
  #allocation11 [shape = 's32[]', space=sflag, size = 0x4, offset = 0, fixed_abs, tag = 'sflag constant byte address 0x0 - dummy sync flag']
  %s0 = inlined_call_operand.hbm [shape: f32[2,32,128], index: 0, kind: input, shape index: {}]
  %s1 = inlined_call_operand.hbm [shape: f32[2,32,128], index: 1, kind: input, shape index: {}]
  %s2 = inlined_call_operand.hbm [shape: f32[32,128], index: 2, kind: input, shape index: {}]
  %s3 = inlined_call_operand.hbm [shape: f32[2,8,128], index: 3, kind: output, shape index: {}]
  %s4 = sld [smem:[#allocation0]]
  $region57: #{tpu_custom_call.1} parent=0
    _
  %s6 = ssub.s32 1, %s4
  %s7 = scalar_select 0, %s6, %s4
  $region1: #{tpu_custom_call.1} parent=0
    #allocation2 [shape = 'u8[32768]{0}', space=vmem, size = 0x8000, scoped, tag = 'input window, operand 0']
    #allocation3 [shape = 's32[2]{0}', space=sflag, size = 0x8, scoped, tag = 'scoped memory for tpu_custom_call.1']
    #allocation4 [shape = 's32[2]{0}', space=sflag, size = 0x8, scoped, tag = 'scoped memory for tpu_custom_call.1']
    #allocation5 [shape = 'u8[32768]{0}', space=vmem, size = 0x8000, scoped, tag = 'input window, operand 1']
    #allocation6 [shape = 's32[2]{0}', space=sflag, size = 0x8, scoped, tag = 'scoped memory for tpu_custom_call.1']
    #allocation7 [shape = 'u8[16384]{0}', space=vmem, size = 0x4000, scoped, tag = 'input window, operand 2']
    #allocation8 [shape = 'u8[8192]{0}', space=vmem, size = 0x2000, scoped, tag = 'output window, operand 0']
    %8 = vsyncpa [#allocation3], 0
    %s9 = scalar_lea.sflag [#allocation3], 1
    %10 = vsyncpa %s9, 0
    %11 = vsyncpa [#allocation6], 0
    %s12 = scalar_lea.sflag [#allocation6], 1
    %13 = vsyncpa %s12, 0
    %14 = vsyncpa [#allocation4], 0
    %s15 = scalar_lea.sflag [#allocation4], 1
    %16 = vsyncpa %s15, 0
    loop: start=0, step=1, limit=4
    $region2: #{tpu_custom_call.1} parent=1 // loop_pre_header
      _
    $region3: #{tpu_custom_call.1} parent=1 // loop_header
      %s18 = sphi 0, %s22
      %p19 = scmp.ge.s32.totalorder %s18, 4
      %s28 = sphi 0, %s30
      %s31 = sphi 0, %s28
      %s32 = sphi 0, %s31
      %s48 = sphi 0, %s32
      %s54 = sphi 0, %s56
      %s57 = sphi 0, %s54
      %s58 = sphi 0, %s57
      %s74 = sphi 0, %s58
      %s80 = sphi 0, %s82
      %s83 = sphi 0, %s80
      %s84 = sphi 0, %s83
      %s100 = sphi 0, %s84
      %s106 = sphi 0, %s108
      %s109 = sphi 0, %s106
      %s110 = sphi 0, %s109
      %s126 = sphi 0, %s110
    $region4: #{tpu_custom_call.1} parent=1 // loop_header_branch
      %21 = sbr.rel (%p19) target = $region8
    $region5: #{tpu_custom_call.1} parent=1 // loop_body
      %s23 = ssub.s32 %s18, 1
      %s24 = ssub.s32 %s18, 2
      %s25 = sadd.s32 %s18, 1
      %s26 = ssub.s32 %s18, %s25
      %p27 = scmp.eq.s32.totalorder %s26, 0
      %s29 = sadd.s32 %s28, 1
      %s30 = scalar_select %p27, %s28, %s29
      %p33 = pneg %p27
      %p34 = scmp.eq.s32.totalorder %s18, 1
      %p35 = por %p33, %p34
      %p36 = scmp.ne.s32.totalorder %s28, %s31
      %p37 = scmp.eq.s32.totalorder %s18, 0
      %p38 = por %p36, %p37
      %p39 = scmp.ne.s32.totalorder %s28, %s31
      %p40 = scmp.eq.s32.totalorder %s23, 1
      %p41 = por %p39, %p40
      %p42 = scmp.ne.s32.totalorder %s31, %s32
      %p43 = scmp.eq.s32.totalorder %s23, 0
      %p44 = por %p42, %p43
      %p45 = scmp.ne.s32.totalorder %s31, %s32
      %p46 = scmp.eq.s32.totalorder %s24, 1
      %p47 = por %p45, %p46
      %p49 = scmp.ne.s32.totalorder %s32, %s48
      %p50 = scmp.eq.s32.totalorder %s24, 0
      %p51 = por %p49, %p50
      %s52 = ssub.s32 %s18, %s25
      %p53 = scmp.eq.s32.totalorder %s52, 0
      %s55 = sadd.s32 %s54, 1
      %s56 = scalar_select %p53, %s54, %s55
      %p59 = pneg %p53
      %p60 = scmp.eq.s32.totalorder %s18, 1
      %p61 = por %p59, %p60
      %p62 = scmp.ne.s32.totalorder %s54, %s57
      %p63 = scmp.eq.s32.totalorder %s18, 0
      %p64 = por %p62, %p63
      %p65 = scmp.ne.s32.totalorder %s54, %s57
      %p66 = scmp.eq.s32.totalorder %s23, 1
      %p67 = por %p65, %p66
      %p68 = scmp.ne.s32.totalorder %s57, %s58
      %p69 = scmp.eq.s32.totalorder %s23, 0
      %p70 = por %p68, %p69
      %p71 = scmp.ne.s32.totalorder %s57, %s58
      %p72 = scmp.eq.s32.totalorder %s24, 1
      %p73 = por %p71, %p72
      %p75 = scmp.ne.s32.totalorder %s58, %s74
      %p76 = scmp.eq.s32.totalorder %s24, 0
      %p77 = por %p75, %p76
      %s78 = ssub.s32 %s18, %s25
      %p79 = scmp.eq.s32.totalorder %s78, 0
      %s81 = sadd.s32 %s80, 1
      %s82 = scalar_select %p79, %s80, %s81
      %p85 = pneg %p79
      %p86 = scmp.eq.s32.totalorder %s18, 1
      %p87 = por %p85, %p86
      %p88 = scmp.ne.s32.totalorder %s80, %s83
      %p89 = scmp.eq.s32.totalorder %s18, 0
      %p90 = por %p88, %p89
      %p91 = scmp.ne.s32.totalorder %s80, %s83
      %p92 = scmp.eq.s32.totalorder %s23, 1
      %p93 = por %p91, %p92
      %p94 = scmp.ne.s32.totalorder %s83, %s84
      %p95 = scmp.eq.s32.totalorder %s23, 0
      %p96 = por %p94, %p95
      %p97 = scmp.ne.s32.totalorder %s83, %s84
      %p98 = scmp.eq.s32.totalorder %s24, 1
      %p99 = por %p97, %p98
      %p101 = scmp.ne.s32.totalorder %s84, %s100
      %p102 = scmp.eq.s32.totalorder %s24, 0
      %p103 = por %p101, %p102
      %s104 = ssub.s32 %s18, %s25
      %p105 = scmp.eq.s32.totalorder %s104, 0
      %s107 = sadd.s32 %s106, 1
      %s108 = scalar_select %p105, %s106, %s107
      %p111 = pneg %p105
      %p112 = scmp.eq.s32.totalorder %s18, 1
      %p113 = por %p111, %p112
      %p114 = scmp.ne.s32.totalorder %s106, %s109
      %p115 = scmp.eq.s32.totalorder %s18, 0
      %p116 = por %p114, %p115
      %p117 = scmp.ne.s32.totalorder %s106, %s109
      %p118 = scmp.eq.s32.totalorder %s23, 1
      %p119 = por %p117, %p118
      %p120 = scmp.ne.s32.totalorder %s109, %s110
      %p121 = scmp.eq.s32.totalorder %s23, 0
      %p122 = por %p120, %p121
      %p123 = scmp.ne.s32.totalorder %s109, %s110
      %p124 = scmp.eq.s32.totalorder %s24, 1
      %p125 = por %p123, %p124
      %p127 = scmp.ne.s32.totalorder %s110, %s126
      %p128 = scmp.eq.s32.totalorder %s24, 0
      %p129 = por %p127, %p128
      %p130 = scmp.le.s32.totalorder 1, %s18
      %p131 = scmp.lt.s32.totalorder %s18, 3
      %p132 = pnand %p130, %p131
      %p133 = pneg %p132
      // Predicated region
      $region9: #{tpu_custom_call.1} parent=5 // pred_check
        _
      $region10: #{tpu_custom_call.1} parent=5 // pred_check_branch
        %135 = sbr.rel (%p132) target = $region12
      $region11: #{tpu_custom_call.1} parent=5 // pred_region
        %s136 = ssub.s32 %s18, 1
      $region12: #{tpu_custom_call.1} parent=5 // pred_fallthru
        _
      %p137 = scmp.lt.s32.totalorder %s18, 2
      // Predicated region
      $region13: #{tpu_custom_call.1} parent=5 // pred_check
        %p138 = pneg %p137
      $region14: #{tpu_custom_call.1} parent=5 // pred_check_branch
        %140 = sbr.rel (%p138) target = $region16
      $region15: #{tpu_custom_call.1} parent=5 // pred_region
        // Predicated region
        $region17: #{tpu_custom_call.1} parent=15 // pred_check
          %p141 = pneg %p38
        $region18: #{tpu_custom_call.1} parent=15 // pred_check_branch
          %143 = sbr.rel (%p141) target = $region20
        $region19: #{tpu_custom_call.1} parent=15 // pred_region
          #allocation10 [shape = 'u32[6]{0}', space=smem, size = 0x18, scoped, tag = 'DMA stride descriptor']
          %s144 = sand.u32 %s28, 1
          %s145 = scalar_lea.sflag [#allocation3], %s144
          %s146 = sand.u32 %s28, 1
          %s147 = smul.addr %s146, 32
          %s148 = scalar_lea.vmem [#allocation2], %s147
          %s149 = smul.u32 2, %s18
          %s151 = ssub.s32 512, 512
          %152 = vsyncadd %s145, %s151
          %s153 = smul.addr %s149, 128
          %s154 = scalar_lea.hbm %s0, %s153
          %s156 = sshll.u32 1, 14
          %s157 = sxor.u32 4294967295, %s156
          %s159 = sld [smem:[#allocation0]]
          %s160 = sadd.s32 2, %s159
          %s162 = sshll.u32 7, 26
          %s163 = sxor.u32 4294967295, %s162
          %s164 = sand.u32 0, %s163
          %s165 = sshll.u32 %s160, 26
          %s166 = sor.u32 %s164, %s165
          %s167 = sshll.u32 %s148, 4
          %s168 = int_to_ptr.vmem [resolvable:$true] %s167
          %174 = sst [smem:[#allocation10]] 512
          %s175 = scalar_lea.smem [#allocation10], 1
          %176 = sst [smem:[%s175]] 256
          %s177 = scalar_lea.smem [#allocation10], 2
          %178 = sst [smem:[%s177]] 2
          %s179 = scalar_lea.smem [#allocation10], 3
          %180 = sst [smem:[%s179]] 128
          %s181 = scalar_lea.smem [#allocation10], 4
          %182 = sst [smem:[%s181]] 128
          %s183 = scalar_lea.smem [#allocation10], 5
          %184 = sst [smem:[%s183]] 8
          %186 = dma.general %s154, 512, %s168, %s145, 131072, [#allocation10], %s166, 0
        $region20: #{tpu_custom_call.1} parent=15 // pred_fallthru
          _
        // Predicated region
        $region21: #{tpu_custom_call.1} parent=15 // pred_check
          %p187 = pneg %p64
        $region22: #{tpu_custom_call.1} parent=15 // pred_check_branch
          %189 = sbr.rel (%p187) target = $region24
        $region23: #{tpu_custom_call.1} parent=15 // pred_region
          #allocation12 [shape = 'u32[6]{0}', space=smem, size = 0x18, scoped, tag = 'DMA stride descriptor']
          %s190 = sand.u32 %s18, 1
          %s191 = scalar_lea.sflag [#allocation6], %s190
          %s192 = sand.u32 %s54, 1
          %s193 = smul.addr %s192, 32
          %s194 = scalar_lea.vmem [#allocation5], %s193
          %s195 = smul.u32 2, %s18
          %s197 = ssub.s32 512, 512
          %198 = vsyncadd %s191, %s197
          %s199 = smul.addr %s195, 128
          %s200 = scalar_lea.hbm %s1, %s199
          %s202 = sshll.u32 1, 14
          %s203 = sxor.u32 4294967295, %s202
          %s205 = sld [smem:[#allocation0]]
          %s206 = sadd.s32 2, %s205
          %s208 = sshll.u32 7, 26
          %s209 = sxor.u32 4294967295, %s208
          %s210 = sand.u32 0, %s209
          %s211 = sshll.u32 %s206, 26
          %s212 = sor.u32 %s210, %s211
          %s213 = sshll.u32 %s194, 4
          %s214 = int_to_ptr.vmem [resolvable:$true] %s213
          %220 = sst [smem:[#allocation12]] 512
          %s221 = scalar_lea.smem [#allocation12], 1
          %222 = sst [smem:[%s221]] 256
          %s223 = scalar_lea.smem [#allocation12], 2
          %224 = sst [smem:[%s223]] 2
          %s225 = scalar_lea.smem [#allocation12], 3
          %226 = sst [smem:[%s225]] 128
          %s227 = scalar_lea.smem [#allocation12], 4
          %228 = sst [smem:[%s227]] 128
          %s229 = scalar_lea.smem [#allocation12], 5
          %230 = sst [smem:[%s229]] 8
          %232 = dma.general %s200, 512, %s214, %s191, 131072, [#allocation12], %s212, 0
        $region24: #{tpu_custom_call.1} parent=15 // pred_fallthru
          _
        // Predicated region
        $region25: #{tpu_custom_call.1} parent=15 // pred_check
          %p233 = pneg %p90
        $region26: #{tpu_custom_call.1} parent=15 // pred_check_branch
          %235 = sbr.rel (%p233) target = $region28
        $region27: #{tpu_custom_call.1} parent=15 // pred_region
          %s236 = sand.u32 %s18, 1
          %s237 = scalar_lea.sflag [#allocation6], %s236
          %s238 = sand.u32 %s80, 1
          %s239 = smul.addr %s238, 16
          %s240 = scalar_lea.vmem [#allocation7], %s239
          %s241 = smul.u32 2, %s18
          %s243 = ssub.s32 256, 256
          %244 = vsyncadd %s237, %s243
          %s245 = smul.addr %s241, 128
          %s246 = scalar_lea.hbm %s2, %s245
          %s247 = sshll.u32 %s240, 4
          %s248 = int_to_ptr.vmem [resolvable:$true] %s247
          %253 = dma.hbm_to_vmem [thread:$0]  %s246, 256, %s248, %s237, 128, 128, 8
        $region28: #{tpu_custom_call.1} parent=15 // pred_fallthru
          _
      $region16: #{tpu_custom_call.1} parent=5 // pred_fallthru
        _
      %p254 = scmp.le.s32.totalorder 1, %s18
      %p255 = scmp.lt.s32.totalorder %s18, 3
      %p256 = pnand %p254, %p255
      %p257 = pneg %p256
      // Predicated region
      $region29: #{tpu_custom_call.1} parent=5 // pred_check
        _
      $region30: #{tpu_custom_call.1} parent=5 // pred_check_branch
        %259 = sbr.rel (%p256) target = $region32
      $region31: #{tpu_custom_call.1} parent=5 // pred_region
        %s260 = ssub.s32 %s18, 1
        %s261 = sand.u32 %s31, 1
        %s262 = scalar_lea.sflag [#allocation3], %s261
        %s263 = sand.u32 %s31, 1
        %s264 = smul.addr %s263, 32
        %s265 = scalar_lea.vmem [#allocation2], %s264
        // Predicated region
        $region33: #{tpu_custom_call.1} parent=31 // pred_check
          %p266 = pneg %p44
        $region34: #{tpu_custom_call.1} parent=31 // pred_check_branch
          %268 = sbr.rel (%p266) target = $region36
        $region35: #{tpu_custom_call.1} parent=31 // pred_region
          %269 = dma.done %s262, 512
        $region36: #{tpu_custom_call.1} parent=31 // pred_fallthru
          _
        %s270 = sand.u32 %s23, 1
        %s271 = scalar_lea.sflag [#allocation6], %s270
        %s272 = sand.u32 %s57, 1
        %s273 = smul.addr %s272, 32
        %s274 = scalar_lea.vmem [#allocation5], %s273
        // Predicated region
        $region37: #{tpu_custom_call.1} parent=31 // pred_check
          %p275 = pneg %p70
        $region38: #{tpu_custom_call.1} parent=31 // pred_check_branch
          %277 = sbr.rel (%p275) target = $region40
        $region39: #{tpu_custom_call.1} parent=31 // pred_region
          %278 = dma.done %s271, 512
        $region40: #{tpu_custom_call.1} parent=31 // pred_fallthru
          _
        %s279 = sand.u32 %s23, 1
        %s280 = scalar_lea.sflag [#allocation6], %s279
        %s281 = sand.u32 %s83, 1
        %s282 = smul.addr %s281, 16
        %s283 = scalar_lea.vmem [#allocation7], %s282
        // Predicated region
        $region41: #{tpu_custom_call.1} parent=31 // pred_check
          %p284 = pneg %p96
        $region42: #{tpu_custom_call.1} parent=31 // pred_check_branch
          %286 = sbr.rel (%p284) target = $region44
        $region43: #{tpu_custom_call.1} parent=31 // pred_region
          %287 = dma.done %s280, 256
        $region44: #{tpu_custom_call.1} parent=31 // pred_fallthru
          _
        %s288 = sand.u32 %s31, 1
        %s289 = scalar_lea.sflag [#allocation3], %s288
        %s290 = sand.u32 %s31, 1
        %s291 = smul.addr %s290, 32
        %s292 = scalar_lea.vmem [#allocation2], %s291
        %p293 = pneg %p44
        %p294 = pneg %p41
        %s295 = sand.u32 %s23, 1
        %s296 = scalar_lea.sflag [#allocation6], %s295
        %s297 = sand.u32 %s57, 1
        %s298 = smul.addr %s297, 32
        %s299 = scalar_lea.vmem [#allocation5], %s298
        %p300 = pneg %p70
        %p301 = pneg %p67
        %s302 = sand.u32 %s23, 1
        %s303 = scalar_lea.sflag [#allocation6], %s302
        %s304 = sand.u32 %s83, 1
        %s305 = smul.addr %s304, 16
        %s306 = scalar_lea.vmem [#allocation7], %s305
        %p307 = pneg %p96
        %p308 = pneg %p93
        %p309 = pneg %p122
        %p310 = pneg %p119
        %s311 = sand.u32 %s109, 1
        %s312 = scalar_lea.sflag [#allocation4], %s311
        %s313 = sand.u32 %s109, 1
        %s314 = smul.addr %s313, 8
        %s315 = scalar_lea.vmem [#allocation8], %s314
        %s316 = smul.u32 2, %s23
        %s317 = smul.u32 2, %s23
        %s318 = smul.u32 2, %s23
        %v319 = vld [vmem:[%s283] sm:$0xff]
        %v320 = vld [vmem:[%s283 + $0x8] sm:$0xff]
        %v321 = vld [vmem:[%s274] sm:$0xff]
        %v322 = vld [vmem:[%s274 + $0x8] sm:$0xff]
        %v323 = vsub.f32 %v321, %v319
        %v324 = vsub.f32 %v322, %v320
        %v325 = vld [vmem:[%s265] sm:$0xff]
        %v326 = vld [vmem:[%s265 + $0x8] sm:$0xff]
        %v327 = vmul.f32 %v323, %v323
        %v328 = vmul.f32 %v324, %v324
        %v329 = vmul.f32 %v325, %v327
        %v330 = vmul.f32 %v326, %v328
        %v331 = vadd.f32 %v329, 0.0
        %v332 = vadd.f32 %v330, 0.0
        %s333 = scalar_lea.vmem %s274, 16 [#allocation5]
        %v334 = vld [vmem:[%s333] sm:$0xff]
        %v335 = vld [vmem:[%s333 + $0x8] sm:$0xff]
        %v336 = vsub.f32 %v334, %v319
        %v337 = vsub.f32 %v335, %v320
        %s338 = scalar_lea.vmem %s265, 16 [#allocation2]
        %v339 = vld [vmem:[%s338] sm:$0xff]
        %v340 = vld [vmem:[%s338 + $0x8] sm:$0xff]
        %v341 = vmul.f32 %v336, %v336
        %v342 = vmul.f32 %v337, %v337
        %v343 = vmul.f32 %v339, %v341
        %v344 = vmul.f32 %v340, %v342
        %v345 = vadd.f32 %v331, %v343
        %v346 = vadd.f32 %v332, %v344
        %v347 = vadd.f32 %v345, %v346
        %348 = vst [vmem:[%s315] sm:$0xff] %v347
        %s349 = sand.u32 %s109, 1
        %s350 = scalar_lea.sflag [#allocation4], %s349
        %s351 = sand.u32 %s109, 1
        %s352 = smul.addr %s351, 8
        %s353 = scalar_lea.vmem [#allocation8], %s352
        // Predicated region
        $region45: #{tpu_custom_call.1} parent=31 // pred_check
          %p354 = pneg %p119
        $region46: #{tpu_custom_call.1} parent=31 // pred_check_branch
          %356 = sbr.rel (%p354) target = $region48
        $region47: #{tpu_custom_call.1} parent=31 // pred_region
          %s358 = ssub.s32 128, 128
          %359 = vsyncadd %s350, %s358
          %s360 = smul.addr %s23, 128
          %s361 = scalar_lea.hbm %s3, %s360
          %s363 = sshll.u32 %s353, 4
          %s364 = int_to_ptr.vmem [resolvable:$true] %s363
          %366 = dma.vmem_to_hbm [thread:$0]  %s364, 128, %s361, %s350
        $region48: #{tpu_custom_call.1} parent=31 // pred_fallthru
          _
      $region32: #{tpu_custom_call.1} parent=5 // pred_fallthru
        _
      %p367 = scmp.le.s32.totalorder 2, %s18
      // Predicated region
      $region49: #{tpu_custom_call.1} parent=5 // pred_check
        %p368 = pneg %p367
      $region50: #{tpu_custom_call.1} parent=5 // pred_check_branch
        %370 = sbr.rel (%p368) target = $region52
      $region51: #{tpu_custom_call.1} parent=5 // pred_region
        %s371 = ssub.s32 %s18, 2
        // Predicated region
        $region53: #{tpu_custom_call.1} parent=51 // pred_check
          %p372 = pneg %p125
        $region54: #{tpu_custom_call.1} parent=51 // pred_check_branch
          %374 = sbr.rel (%p372) target = $region56
        $region55: #{tpu_custom_call.1} parent=51 // pred_region
          %s375 = sand.u32 %s110, 1
          %s376 = scalar_lea.sflag [#allocation4], %s375
          %s377 = sand.u32 %s110, 1
          %s378 = smul.addr %s377, 8
          %s379 = scalar_lea.vmem [#allocation8], %s378
          %380 = dma.done %s376, 128
        $region56: #{tpu_custom_call.1} parent=51 // pred_fallthru
          _
      $region52: #{tpu_custom_call.1} parent=5 // pred_fallthru
        _
    $region6: #{tpu_custom_call.1} parent=1 // loop_footer
      %s22 = sadd.s32 1, %s18
    $region7: #{tpu_custom_call.1} parent=1 // loop_footer_branch
      %17 = sbr.rel target = $region3
    $region8: #{tpu_custom_call.1} parent=1 // loop_exit
      _
    %381 = vsyncpa [#allocation3], 1
    %s382 = scalar_lea.sflag [#allocation3], 1
    %383 = vsyncpa %s382, 1
    %384 = vsyncpa [#allocation6], 1
    %s385 = scalar_lea.sflag [#allocation6], 1
    %386 = vsyncpa %s385, 1
    %387 = vsyncpa [#allocation4], 1
    %s388 = scalar_lea.sflag [#allocation4], 1
    %389 = vsyncpa %s388, 1

</llo_original>
